<compile_context>
chip_gen: v7x
topology: tpu7x:2x2x1
jax: 0.10.0
libtpu: 0.0.40
codegen_flags: <defaults>
</compile_context>

<pallas_src>
import functools

import jax
import jax.numpy as jnp
from jax import lax
from jax.experimental import pallas as pl
from jax.experimental.pallas import tpu as pltpu


def _round_up(x, m):
    return (x + m - 1) // m * m


def _mmd_rbf_tile_kernel(ti_ref, tj_ref, sqi_ref, sqj_ref, ui_ref, uj_ref,
                         out_ref, acc_ref, *, kernel_mul, kernel_num,
                         fix_sigma):
    i = pl.program_id(0)
    j = pl.program_id(1)

    @pl.when((i == 0) & (j == 0))
    def _init():
        acc_ref[0] = jnp.float32(0.0)

    ti = ti_ref[...]                                  # (TM, Dp) f32
    tj = tj_ref[...]                                  # (TN, Dp) f32
    tm, tn = ti.shape[0], tj.shape[0]

    # Pairwise squared distances for this tile:
    #   L2[a, b] = ||t_a||^2 + ||t_b||^2 - 2 <t_a, t_b>
    # gram contracts over D on both operands directly (MXU, no transpose).
    gram = lax.dot_general(ti, tj,
                           dimension_numbers=(((1,), (1,)), ((), ())),
                           preferred_element_type=jnp.float32)   # (TM, TN)
    l2 = jnp.maximum(sqi_ref[...] + sqj_ref[...] - 2.0 * gram, 0.0)

    # Force the global diagonal to exactly 0 (reference computes (a-a)^2 = 0;
    # the norm trick leaves O(eps) residue there which the exp sum amplifies).
    r = lax.broadcasted_iota(jnp.int32, (tm, tn), 0) + i * tm
    c = lax.broadcasted_iota(jnp.int32, (tm, tn), 1) + j * tn
    l2 = jnp.where(r == c, 0.0, l2)

    # Multi-bandwidth RBF sum.
    bw_min = fix_sigma / (kernel_mul ** (kernel_num // 2))
    if kernel_mul == 2.0:
        # exp(-l2/bw_i) = base^(2^(K-1-i)) with base = exp(-l2/bw_max):
        # 1 EUP exp + (kernel_num-1) VPU squarings instead of 12 exps.
        bw_max = bw_min * (kernel_mul ** (kernel_num - 1))
        term = jnp.exp(l2 * (-1.0 / bw_max))
        ksum = term
        for _ in range(kernel_num - 1):
            term = term * term
            ksum = ksum + term
    else:
        # Exact-per-term fallback for non power-of-two kernel_mul.
        ksum = jnp.zeros_like(l2)
        for k in range(kernel_num):
            ksum = ksum + jnp.exp(l2 * (-1.0 / (bw_min * kernel_mul ** k)))

    # Fused signed block means: sum(K * u u^T).  Reduce lanes first, then
    # sublanes, so no (TM, TN) weight matrix is materialized.
    row_sums = jnp.sum(ksum * uj_ref[...], axis=1, keepdims=True)   # (TM, 1)
    acc_ref[0] = acc_ref[0] + jnp.sum(row_sums * ui_ref[...])

    @pl.when((i == pl.num_programs(0) - 1) & (j == pl.num_programs(1) - 1))
    def _finalize():
        out_ref[0, 0] = acc_ref[0]


def mmd_loss_rbf(source, target, *, kernel_mul=2.0, kernel_num=12,
                 fix_sigma=1.0, block=256):
    """MMDLoss.forward with kernel_type='rbf' and fix_sigma truthy (defaults)."""
    assert source.shape[1] == target.shape[1]
    assert block % 128 == 0
    ns, d = int(source.shape[0]), int(source.shape[1])
    nt = int(target.shape[0])
    n = ns + nt

    # Tile size / padding: single tile (rounded to sublanes) for small N,
    # 256x256 f32 tiles otherwise.  Feature dim padded to full 128-lane rows.
    t = max(8, _round_up(n, 8)) if n <= block else block
    n_pad = _round_up(n, t)
    d_pad = _round_up(d, 128)

    total = jnp.concatenate([source, target], axis=0).astype(jnp.float32)
    total_p = jnp.zeros((n_pad, d_pad), jnp.float32).at[:n, :d].set(total)

    # Precomputed squared norms (row- and lane-oriented views, no in-kernel
    # transpose) and the signed-mean weight vector u (0 on padded rows).
    sq = jnp.sum(total_p * total_p, axis=1)
    sq_row = sq.reshape(n_pad, 1)
    sq_col = sq.reshape(1, n_pad)
    u = jnp.zeros((n_pad,), jnp.float32)
    u = u.at[:ns].set(1.0 / ns).at[ns:n].set(-1.0 / nt)
    u_row = u.reshape(n_pad, 1)
    u_col = u.reshape(1, n_pad)

    kernel = functools.partial(
        _mmd_rbf_tile_kernel,
        kernel_mul=float(kernel_mul),
        kernel_num=int(kernel_num),
        fix_sigma=float(fix_sigma),
    )

    grid = (n_pad // t, n_pad // t)
    out = pl.pallas_call(
        kernel,
        out_shape=jax.ShapeDtypeStruct((1, 1), jnp.float32),
        grid_spec=pltpu.PrefetchScalarGridSpec(
            num_scalar_prefetch=0,
            grid=grid,
            in_specs=[
                pl.BlockSpec((t, d_pad), lambda i, j: (i, 0)),   # row tile
                pl.BlockSpec((t, d_pad), lambda i, j: (j, 0)),   # col tile
                pl.BlockSpec((t, 1), lambda i, j: (i, 0)),       # ||.||^2 rows
                pl.BlockSpec((1, t), lambda i, j: (0, j)),       # ||.||^2 cols
                pl.BlockSpec((t, 1), lambda i, j: (i, 0)),       # u rows
                pl.BlockSpec((1, t), lambda i, j: (0, j)),       # u cols
            ],
            out_specs=pl.BlockSpec(memory_space=pltpu.MemorySpace.SMEM),
            scratch_shapes=[pltpu.SMEM((1,), jnp.float32)],
        ),
        compiler_params=pltpu.CompilerParams(
            dimension_semantics=("arbitrary", "arbitrary")),
    )(total_p, total_p, sq_row, sq_col, u_row, u_col)
    return out[0, 0]


def _mmd_loss_rbf_ref(source, target, *, kernel_mul=2.0, kernel_num=12,
                      fix_sigma=1.0):
    """Pure-JAX reference mirroring the PyTorch module exactly."""
    ns = source.shape[0]
    total = jnp.concatenate([source, target], axis=0).astype(jnp.float32)
    diff = total[None, :, :] - total[:, None, :]
    l2 = jnp.sum(diff * diff, axis=2)
    bandwidth = fix_sigma / (kernel_mul ** (kernel_num // 2))
    kernels = sum(jnp.exp(-l2 / (bandwidth * kernel_mul ** i))
                  for i in range(kernel_num))
    xx = jnp.mean(kernels[:ns, :ns])
    yy = jnp.mean(kernels[ns:, ns:])
    xy = jnp.mean(kernels[:ns, ns:])
    return xx + yy - 2.0 * xy


if __name__ == "__main__":
    key = jax.random.PRNGKey(0)
    k1, k2, k3, k4 = jax.random.split(key, 4)

    # Small shapes consistent with the forward: source/target are (batch, hidden).
    src = jax.random.normal(k1, (8, 32), dtype=jnp.float32)
    tgt = 0.5 * jax.random.normal(k2, (8, 32), dtype=jnp.float32) + 0.25
    loss = jax.block_until_ready(mmd_loss_rbf(src, tgt))
    ref = _mmd_loss_rbf_ref(src, tgt)
    assert jnp.allclose(loss, ref, rtol=1e-4, atol=5e-5), (loss, ref)

    # Multi-tile case: exercises the (i, j) grid, N/D padding, masking and
    # unequal batch sizes (N = 304 -> 2x2 grid of 256-tiles).
    src2 = jax.random.normal(k3, (160, 48), dtype=jnp.float32)
    tgt2 = 0.7 * jax.random.normal(k4, (144, 48), dtype=jnp.float32) + 0.1
    loss2 = jax.block_until_ready(mmd_loss_rbf(src2, tgt2))
    ref2 = _mmd_loss_rbf_ref(src2, tgt2)
    assert jnp.allclose(loss2, ref2, rtol=1e-4, atol=5e-5), (loss2, ref2)

    print("KERNEL_OK")
</pallas_src>

<mosaic_0001>
module attributes {stable_mosaic.version = 11 : i64} {
  func.func @_mmd_rbf_tile_kernel(%arg0: i32, %arg1: i32, %arg2: memref<16x128xf32, #tpu.memory_space<vmem>>, %arg3: memref<16x128xf32, #tpu.memory_space<vmem>>, %arg4: memref<16x1xf32, #tpu.memory_space<vmem>>, %arg5: memref<1x16xf32, #tpu.memory_space<vmem>>, %arg6: memref<16x1xf32, #tpu.memory_space<vmem>>, %arg7: memref<1x16xf32, #tpu.memory_space<vmem>>, %arg8: memref<1x1xf32, #tpu.memory_space<smem>>, %arg9: memref<1xf32, #tpu.memory_space<smem>>) attributes {dimension_semantics = [#tpu.dimension_semantics<arbitrary>, #tpu.dimension_semantics<arbitrary>], iteration_bounds = array<i64: 1, 1>, scalar_prefetch = 0 : i64, scratch_operands = 1 : i64, tpu.core_type = #tpu.core_type<tc>, window_params = [{transform_indices = @transform_0, window_bounds = array<i64: 16, 128>}, {transform_indices = @transform_1, window_bounds = array<i64: 16, 128>}, {transform_indices = @transform_2, window_bounds = array<i64: 16, 1>}, {transform_indices = @transform_3, window_bounds = array<i64: 1, 16>}, {transform_indices = @transform_4, window_bounds = array<i64: 16, 1>}, {transform_indices = @transform_5, window_bounds = array<i64: 1, 16>}, {transform_indices = @transform_6, window_bounds = array<i64: 1, 1>}]} {
    %c0_i32 = arith.constant 0 : i32
    %0 = arith.cmpi eq, %arg0, %c0_i32 : i32
    %c0_i32_0 = arith.constant 0 : i32
    %1 = arith.cmpi eq, %arg1, %c0_i32_0 : i32
    %2 = arith.andi %0, %1 : i1
    %3 = arith.extui %2 : i1 to i32
    %c0_i32_1 = arith.constant 0 : i32
    %4 = arith.cmpi ne, %3, %c0_i32_1 : i32
    scf.if %4 {
      %cst_25 = arith.constant 0.000000e+00 : f32
      %c0_26 = arith.constant 0 : index
      %73 = memref.load %arg9[%c0_26] : memref<1xf32, #tpu.memory_space<smem>>
      memref.store %cst_25, %arg9[%c0_26] : memref<1xf32, #tpu.memory_space<smem>>
    } else {
    }
    %c0 = arith.constant 0 : index
    %c0_2 = arith.constant 0 : index
    %5 = vector.load %arg2[%c0, %c0_2] : memref<16x128xf32, #tpu.memory_space<vmem>>, vector<16x128xf32>
    %c0_3 = arith.constant 0 : index
    %c0_4 = arith.constant 0 : index
    %6 = vector.load %arg3[%c0_3, %c0_4] : memref<16x128xf32, #tpu.memory_space<vmem>>, vector<16x128xf32>
    %cst = arith.constant dense<0.000000e+00> : vector<16x16xf32>
    %7 = tpu.matmul %5, %6, %cst {dimension_numbers = #tpu.dot_dimension_numbers<[1], [1], [0], [0], [0, 0, 1, 0], [], []>} : vector<16x128xf32>, vector<16x128xf32>, vector<16x16xf32> -> vector<16x16xf32>
    %c0_5 = arith.constant 0 : index
    %c0_6 = arith.constant 0 : index
    %8 = vector.load %arg4[%c0_5, %c0_6] : memref<16x1xf32, #tpu.memory_space<vmem>>, vector<16x1xf32>
    %c0_7 = arith.constant 0 : index
    %c0_8 = arith.constant 0 : index
    %9 = vector.load %arg5[%c0_7, %c0_8] : memref<1x16xf32, #tpu.memory_space<vmem>>, vector<1x16xf32>
    %10 = vector.broadcast %8 : vector<16x1xf32> to vector<16x16xf32>
    %11 = vector.broadcast %9 : vector<1x16xf32> to vector<16x16xf32>
    %12 = arith.addf %10, %11 : vector<16x16xf32>
    %cst_9 = arith.constant 2.000000e+00 : f32
    %13 = vector.broadcast %cst_9 : f32 to vector<16x16xf32>
    %14 = arith.mulf %13, %7 : vector<16x16xf32>
    %15 = arith.subf %12, %14 : vector<16x16xf32>
    %cst_10 = arith.constant 0.000000e+00 : f32
    %16 = vector.broadcast %cst_10 : f32 to vector<16x16xf32>
    %17 = arith.maximumf %15, %16 : vector<16x16xf32>
    %18 = tpu.iota {dimensions = array<i32: 0>} : vector<16x16xi32>
    %c16_i32 = arith.constant 16 : i32
    %19 = arith.muli %arg0, %c16_i32 : i32
    %20 = vector.broadcast %19 : i32 to vector<16x16xi32>
    %21 = arith.addi %18, %20 : vector<16x16xi32>
    %22 = tpu.iota {dimensions = array<i32: 1>} : vector<16x16xi32>
    %c16_i32_11 = arith.constant 16 : i32
    %23 = arith.muli %arg1, %c16_i32_11 : i32
    %24 = vector.broadcast %23 : i32 to vector<16x16xi32>
    %25 = arith.addi %22, %24 : vector<16x16xi32>
    %26 = arith.cmpi eq, %21, %25 : vector<16x16xi32>
    %cst_12 = arith.constant 0.000000e+00 : f32
    %27 = vector.broadcast %cst_12 : f32 to vector<16x16xf32>
    %28 = arith.select %26, %27, %17 : vector<16x16xi1>, vector<16x16xf32>
    %cst_13 = arith.constant -3.125000e-02 : f32
    %29 = vector.broadcast %cst_13 : f32 to vector<16x16xf32>
    %30 = arith.mulf %28, %29 : vector<16x16xf32>
    %31 = math.exp %30 : vector<16x16xf32>
    %32 = arith.mulf %31, %31 : vector<16x16xf32>
    %33 = arith.addf %31, %32 : vector<16x16xf32>
    %34 = arith.mulf %32, %32 : vector<16x16xf32>
    %35 = arith.addf %33, %34 : vector<16x16xf32>
    %36 = arith.mulf %34, %34 : vector<16x16xf32>
    %37 = arith.addf %35, %36 : vector<16x16xf32>
    %38 = arith.mulf %36, %36 : vector<16x16xf32>
    %39 = arith.addf %37, %38 : vector<16x16xf32>
    %40 = arith.mulf %38, %38 : vector<16x16xf32>
    %41 = arith.addf %39, %40 : vector<16x16xf32>
    %42 = arith.mulf %40, %40 : vector<16x16xf32>
    %43 = arith.addf %41, %42 : vector<16x16xf32>
    %44 = arith.mulf %42, %42 : vector<16x16xf32>
    %45 = arith.addf %43, %44 : vector<16x16xf32>
    %46 = arith.mulf %44, %44 : vector<16x16xf32>
    %47 = arith.addf %45, %46 : vector<16x16xf32>
    %48 = arith.mulf %46, %46 : vector<16x16xf32>
    %49 = arith.addf %47, %48 : vector<16x16xf32>
    %50 = arith.mulf %48, %48 : vector<16x16xf32>
    %51 = arith.addf %49, %50 : vector<16x16xf32>
    %52 = arith.mulf %50, %50 : vector<16x16xf32>
    %53 = arith.addf %51, %52 : vector<16x16xf32>
    %c0_14 = arith.constant 0 : index
    %c0_15 = arith.constant 0 : index
    %54 = vector.load %arg7[%c0_14, %c0_15] : memref<1x16xf32, #tpu.memory_space<vmem>>, vector<1x16xf32>
    %55 = vector.broadcast %54 : vector<1x16xf32> to vector<16x16xf32>
    %56 = arith.mulf %53, %55 : vector<16x16xf32>
    %cst_16 = arith.constant dense<0.000000e+00> : vector<16xf32>
    %57 = vector.multi_reduction <add>, %56, %cst_16 [1] : vector<16x16xf32> to vector<16xf32>
    %58 = vector.shape_cast %57 : vector<16xf32> to vector<16x1xf32>
    %c0_17 = arith.constant 0 : index
    %59 = memref.load %arg9[%c0_17] : memref<1xf32, #tpu.memory_space<smem>>
    %c0_18 = arith.constant 0 : index
    %c0_19 = arith.constant 0 : index
    %60 = vector.load %arg6[%c0_18, %c0_19] : memref<16x1xf32, #tpu.memory_space<vmem>>, vector<16x1xf32>
    %61 = arith.mulf %58, %60 : vector<16x1xf32>
    %62 = vector.shape_cast %61 : vector<16x1xf32> to vector<1x16x1xf32>
    %cst_20 = arith.constant dense<0.000000e+00> : vector<1xf32>
    %63 = vector.multi_reduction <add>, %62, %cst_20 [1, 2] : vector<1x16x1xf32> to vector<1xf32>
    %64 = vector.shape_cast %63 : vector<1xf32> to vector<1x1x1xf32>
    %65 = vector.extract %64[0, 0, 0] : f32 from vector<1x1x1xf32>
    %66 = arith.addf %59, %65 : f32
    %c0_21 = arith.constant 0 : index
    %67 = memref.load %arg9[%c0_21] : memref<1xf32, #tpu.memory_space<smem>>
    memref.store %66, %arg9[%c0_21] : memref<1xf32, #tpu.memory_space<smem>>
    %c0_i32_22 = arith.constant 0 : i32
    %68 = arith.cmpi eq, %arg0, %c0_i32_22 : i32
    %c0_i32_23 = arith.constant 0 : i32
    %69 = arith.cmpi eq, %arg1, %c0_i32_23 : i32
    %70 = arith.andi %68, %69 : i1
    %71 = arith.extui %70 : i1 to i32
    %c0_i32_24 = arith.constant 0 : i32
    %72 = arith.cmpi ne, %71, %c0_i32_24 : i32
    scf.if %72 {
      %c0_25 = arith.constant 0 : index
      %73 = memref.load %arg9[%c0_25] : memref<1xf32, #tpu.memory_space<smem>>
      %c0_26 = arith.constant 0 : index
      %c0_27 = arith.constant 0 : index
      %74 = memref.load %arg8[%c0_26, %c0_27] : memref<1x1xf32, #tpu.memory_space<smem>>
      memref.store %73, %arg8[%c0_26, %c0_27] : memref<1x1xf32, #tpu.memory_space<smem>>
    } else {
    }
    return
  }
  func.func @transform_0(%arg0: i32, %arg1: i32) -> (i32, i32) {
    %c0_i32 = arith.constant 0 : i32
    %c0_i32_0 = arith.constant 0 : i32
    return %arg0, %c0_i32 : i32, i32
  }
  func.func @transform_1(%arg0: i32, %arg1: i32) -> (i32, i32) {
    %c0_i32 = arith.constant 0 : i32
    %c0_i32_0 = arith.constant 0 : i32
    return %arg1, %c0_i32 : i32, i32
  }
  func.func @transform_2(%arg0: i32, %arg1: i32) -> (i32, i32) {
    %c0_i32 = arith.constant 0 : i32
    %c0_i32_0 = arith.constant 0 : i32
    return %arg0, %c0_i32 : i32, i32
  }
  func.func @transform_3(%arg0: i32, %arg1: i32) -> (i32, i32) {
    %c0_i32 = arith.constant 0 : i32
    %c0_i32_0 = arith.constant 0 : i32
    return %c0_i32, %arg1 : i32, i32
  }
  func.func @transform_4(%arg0: i32, %arg1: i32) -> (i32, i32) {
    %c0_i32 = arith.constant 0 : i32
    %c0_i32_0 = arith.constant 0 : i32
    return %arg0, %c0_i32 : i32, i32
  }
  func.func @transform_5(%arg0: i32, %arg1: i32) -> (i32, i32) {
    %c0_i32 = arith.constant 0 : i32
    %c0_i32_0 = arith.constant 0 : i32
    return %c0_i32, %arg1 : i32, i32
  }
  func.func @transform_6(%arg0: i32, %arg1: i32) -> (i32, i32) {
    %c0_i32 = arith.constant 0 : i32
    %c0_i32_0 = arith.constant 0 : i32
    %c0_i32_1 = arith.constant 0 : i32
    return %c0_i32, %c0_i32_0 : i32, i32
  }
}

</mosaic_0001>

<llo_original>
// kernel: tpu_custom_call.1
$region0: #{tpu_custom_call.1}
  #allocation0 [shape = 'u32[]', space=smem, size = 0x4, offset = 0x4, fixed_abs, tag = 'smem constant byte address 0x4 - core index']
  #allocation1 [shape = 'u32[144,128]{1,0:T(1,128)}', space=vmem, size = 0x12000, scoped, tag = 'internal scratch']
  #allocation2 [shape = 'f32[1]{0:T(128)}', space=smem, size = 0x200, scoped, tag = 'scratch operand']
  %s0 = inlined_call_operand.vmem [shape: f32[16,128], index: 0, kind: input, shape index: {}]
  %s1 = inlined_call_operand.vmem [shape: f32[16,128], index: 1, kind: input, shape index: {}]
  %s2 = inlined_call_operand.vmem [shape: f32[16,1], index: 2, kind: input, shape index: {}]
  %s3 = inlined_call_operand.vmem [shape: f32[1,16], index: 3, kind: input, shape index: {}]
  %s4 = inlined_call_operand.vmem [shape: f32[16,1], index: 4, kind: input, shape index: {}]
  %s5 = inlined_call_operand.vmem [shape: f32[1,16], index: 5, kind: input, shape index: {}]
  %s6 = inlined_call_operand.hbm [shape: f32[1,1], index: 6, kind: output, shape index: {}]
  %s7 = sld [smem:[#allocation0]]
  $region42: #{tpu_custom_call.1} parent=0
    _
  %s9 = ssub.s32 1, %s7
  %s10 = scalar_select 0, %s9, %s7
  $region1: #{tpu_custom_call.1} parent=0
    #allocation3 [shape = 'u8[512]{0}', space=smem, size = 0x200, scoped, tag = 'output window, operand 0, single buffered']
    #allocation4 [shape = 's32[1]{0}', space=sflag, size = 0x4, scoped, tag = 'scoped memory for tpu_custom_call.1']
    %11 = vsyncpa [#allocation4], 0
    // Predicated region
    $region2: #{tpu_custom_call.1} parent=1 // pred_check
      _
    $region3: #{tpu_custom_call.1} parent=1 // pred_check_branch
      %13 = sbr.rel (0) target = $region5
    $region4: #{tpu_custom_call.1} parent=1 // pred_region
      _
    $region5: #{tpu_custom_call.1} parent=1 // pred_fallthru
      _
    // Predicated region
    $region6: #{tpu_custom_call.1} parent=1 // pred_check
      _
    $region7: #{tpu_custom_call.1} parent=1 // pred_check_branch
      %15 = sbr.rel (0) target = $region9
    $region8: #{tpu_custom_call.1} parent=1 // pred_region
      _
    $region9: #{tpu_custom_call.1} parent=1 // pred_fallthru
      _
    // Predicated region
    $region10: #{tpu_custom_call.1} parent=1 // pred_check
      _
    $region11: #{tpu_custom_call.1} parent=1 // pred_check_branch
      %17 = sbr.rel (0) target = $region13
    $region12: #{tpu_custom_call.1} parent=1 // pred_region
      _
    $region13: #{tpu_custom_call.1} parent=1 // pred_fallthru
      _
    // Predicated region
    $region14: #{tpu_custom_call.1} parent=1 // pred_check
      _
    $region15: #{tpu_custom_call.1} parent=1 // pred_check_branch
      %19 = sbr.rel (0) target = $region17
    $region16: #{tpu_custom_call.1} parent=1 // pred_region
      _
    $region17: #{tpu_custom_call.1} parent=1 // pred_fallthru
      _
    // Predicated region
    $region18: #{tpu_custom_call.1} parent=1 // pred_check
      _
    $region19: #{tpu_custom_call.1} parent=1 // pred_check_branch
      %21 = sbr.rel (0) target = $region21
    $region20: #{tpu_custom_call.1} parent=1 // pred_region
      _
    $region21: #{tpu_custom_call.1} parent=1 // pred_fallthru
      _
    // Predicated region
    $region22: #{tpu_custom_call.1} parent=1 // pred_check
      _
    $region23: #{tpu_custom_call.1} parent=1 // pred_check_branch
      %23 = sbr.rel (0) target = $region25
    $region24: #{tpu_custom_call.1} parent=1 // pred_region
      _
    $region25: #{tpu_custom_call.1} parent=1 // pred_fallthru
      _
    %p24 = scmp.eq.s32.totalorder 0, 0
    %p25 = scmp.eq.s32.totalorder 0, 0
    %p26 = pnand %p24, %p25
    %p27 = pneg %p26
    // Predicated region
    $region26: #{tpu_custom_call.1} parent=1 // pred_check
      _
    $region27: #{tpu_custom_call.1} parent=1 // pred_check_branch
      %29 = sbr.rel (%p26) target = $region29
    $region28: #{tpu_custom_call.1} parent=1 // pred_region
      %s30 = scalar_lea.smem [#allocation2], 0
      %31 = sst [smem:[%s30]] 0.0
    $region29: #{tpu_custom_call.1} parent=1 // pred_fallthru
      _
    %v32 = vld [vmem:[%s0] sm:$0xff]
    %v33 = vld [vmem:[%s0 + $0x8] sm:$0xff]
    %v34 = vld [vmem:[%s1] sm:$0xff]
    %v35 = vld [vmem:[%s1 + $0x8] sm:$0xff]
    %36 = vmatprep.subr.mxu0 0.0
    %37 = vmatpush1.xpose.msra.mxu0 %v34
    %38 = vmatprep.subr.mxu0 0.0
    %39 = vmatpush1.xpose.msra.mxu0 %v35
    %40 = vmatprep.subr.mxu0 0.0
    %41 = vmatpush1.xpose.msra.mxu0 0.0
    %42 = vmatprep.subr.mxu0 0.0
    %43 = vmatpush1.xpose.msra.mxu0 0.0
    %44 = vmatprep.subr.mxu0 0.0
    %45 = vmatpush1.xpose.msra.mxu0 0.0
    %46 = vmatprep.subr.mxu0 0.0
    %47 = vmatpush1.xpose.msra.mxu0 0.0
    %48 = vmatprep.subr.mxu0 0.0
    %49 = vmatpush1.xpose.msra.mxu0 0.0
    %50 = vmatprep.subr.mxu0 0.0
    %51 = vmatpush1.xpose.msra.mxu0 0.0
    %52 = vmatprep.subr.mxu0 0.0
    %53 = vmatpush1.xpose.msra.mxu0 0.0
    %54 = vmatprep.subr.mxu0 0.0
    %55 = vmatpush1.xpose.msra.mxu0 0.0
    %56 = vmatprep.subr.mxu0 0.0
    %57 = vmatpush1.xpose.msra.mxu0 0.0
    %58 = vmatprep.subr.mxu0 0.0
    %59 = vmatpush1.xpose.msra.mxu0 0.0
    %60 = vmatprep.subr.mxu0 0.0
    %61 = vmatpush1.xpose.msra.mxu0 0.0
    %62 = vmatprep.subr.mxu0 0.0
    %63 = vmatpush1.xpose.msra.mxu0 0.0
    %64 = vmatprep.subr.mxu0 0.0
    %65 = vmatpush1.xpose.msra.mxu0 0.0
    %66 = vmatprep.subr.mxu0 0.0
    %67 = vmatpush1.xpose.msra.mxu0 0.0
    %68 = vmatprep.subr.mxu0 0.0
    %69 = vmatpush1.xpose.msra.mxu0 0.0
    %70 = vmatprep.subr.mxu0 0.0
    %71 = vmatpush1.xpose.msra.mxu0 0.0
    %72 = vmatprep.subr.mxu0 0.0
    %73 = vmatpush1.xpose.msra.mxu0 0.0
    %74 = vmatprep.subr.mxu0 0.0
    %75 = vmatpush1.xpose.msra.mxu0 0.0
    %76 = vmatprep.subr.mxu0 0.0
    %77 = vmatpush1.xpose.msra.mxu0 0.0
    %78 = vmatprep.subr.mxu0 0.0
    %79 = vmatpush1.xpose.msra.mxu0 0.0
    %80 = vmatprep.subr.mxu0 0.0
    %81 = vmatpush1.xpose.msra.mxu0 0.0
    %82 = vmatprep.subr.mxu0 0.0
    %83 = vmatpush1.xpose.msra.mxu0 0.0
    %84 = vmatprep.subr.mxu0 0.0
    %85 = vmatpush1.xpose.msra.mxu0 0.0
    %86 = vmatprep.subr.mxu0 0.0
    %87 = vmatpush1.xpose.msra.mxu0 0.0
    %88 = vmatprep.subr.mxu0 0.0
    %89 = vmatpush1.xpose.msra.mxu0 0.0
    %90 = vmatprep.subr.mxu0 0.0
    %91 = vmatpush1.xpose.msra.mxu0 0.0
    %92 = vmatprep.subr.mxu0 0.0
    %93 = vmatpush1.xpose.msra.mxu0 0.0
    %94 = vmatprep.subr.mxu0 0.0
    %95 = vmatpush1.xpose.msra.mxu0 0.0
    %96 = vmatprep.subr.mxu0 0.0
    %97 = vmatpush1.xpose.msra.mxu0 0.0
    %98 = vmatprep.subr.mxu0 0.0
    %99 = vmatpush1.xpose.msra.mxu0 0.0
    %100 = vmatprep.mubr.f32.mxu0 0.0
    %101 = vmatmul.mubr.f32.gmra.mrb[0].mxu0 %v32
    %v102 = vpop.f32.mrb[0].mxu0
    %v103 = vadd.f32 0.0, %v102
    %v104 = vpop.f32.mrb[0].mxu0
    %105 = vmatprep.mubr.f32.mxu0 0.0
    %106 = vmatmul.mubr.f32.gmra.mrb[0].mxu0 %v33
    %v107 = vpop.f32.mrb[0].mxu0
    %v108 = vadd.f32 0.0, %v107
    %v109 = vpop.f32.mrb[0].mxu0
    %110 = vdwg.mxu0
    %v111 = vld [vmem:[%s2] sm:$0xff]
    %v112 = vld [vmem:[%s2 + $0x8] sm:$0xff]
    %v113 = vld [vmem:[%s3] sm:$0x1]
    %115 = vset.pattern.permute.xlu0 0
    %116 = vperm.xlu0 %115, %v111
    %v117 = vpop.permute.xlu0 %116
    %120 = vset.pattern.permute.xlu0 0
    %121 = vperm.xlu0 %120, %v112
    %v122 = vpop.permute.xlu0 %121
    %v125 = vlaneseq
    %v126 = vshrl.u32 %v125, 7
    %v127 = vsub.s32 0, %v126
    %v128 = vrot.slane %v113, %v127
    %v130 = vadd.f32 %v117, %v128
    %v131 = vadd.f32 %v122, %v128
    %v132 = vmul.f32 %v103, 2.0
    %v133 = vmul.f32 %v108, 2.0
    %v134 = vsub.f32 %v130, %v132
    %v135 = vsub.f32 %v131, %v133
    %v136 = vmax.f32 %v134, 0.0
    %v137 = vmax.f32 %v135, 0.0
    %v138 = vlaneseq
    %v139 = vshrl.u32 %v138, 7
    %v140 = vadd.s32 %v139, 8
    %s141 = smul.u32 0, 16
    %v142 = vstv %s141
    %v143 = vadd.s32 %v139, %v142
    %v144 = vadd.s32 %v140, %v142
    %v145 = vlaneseq
    %v146 = vand.u32 %v145, 127
    %s147 = smul.u32 0, 16
    %v148 = vstv %s147
    %v149 = vadd.s32 %v146, %v148
    %vm150 = vcmp.eq.s32.totalorder %v143, %v149
    %vm151 = vcmp.eq.s32.totalorder %v144, %v149
    %v152 = vsel %vm150, 0.0, %v136
    %v153 = vsel %vm151, 0.0, %v137
    %v154 = vmul.f32 %v152, -0.03125
    %v155 = vmul.f32 %v153, -0.03125
    %v156 = vmul.f32 %v154, 1.442695
    %v157 = vpow.pop %v156
    %v158 = vmul.f32 %v155, 1.442695
    %v159 = vpow.pop %v158
    %v160 = vmul.f32 %v157, %v157
    %v161 = vmul.f32 %v159, %v159
    %v162 = vadd.f32 %v157, %v160
    %v163 = vadd.f32 %v159, %v161
    %v164 = vmul.f32 %v160, %v160
    %v165 = vmul.f32 %v161, %v161
    %v166 = vadd.f32 %v162, %v164
    %v167 = vadd.f32 %v163, %v165
    %v168 = vmul.f32 %v164, %v164
    %v169 = vmul.f32 %v165, %v165
    %v170 = vadd.f32 %v166, %v168
    %v171 = vadd.f32 %v167, %v169
    %v172 = vmul.f32 %v168, %v168
    %v173 = vmul.f32 %v169, %v169
    %v174 = vadd.f32 %v170, %v172
    %v175 = vadd.f32 %v171, %v173
    %v176 = vmul.f32 %v172, %v172
    %v177 = vmul.f32 %v173, %v173
    %v178 = vadd.f32 %v174, %v176
    %v179 = vadd.f32 %v175, %v177
    %v180 = vmul.f32 %v176, %v176
    %v181 = vmul.f32 %v177, %v177
    %v182 = vadd.f32 %v178, %v180
    %v183 = vadd.f32 %v179, %v181
    %v184 = vmul.f32 %v180, %v180
    %v185 = vmul.f32 %v181, %v181
    %v186 = vadd.f32 %v182, %v184
    %v187 = vadd.f32 %v183, %v185
    %v188 = vmul.f32 %v184, %v184
    %v189 = vmul.f32 %v185, %v185
    %v190 = vadd.f32 %v186, %v188
    %v191 = vadd.f32 %v187, %v189
    %v192 = vmul.f32 %v188, %v188
    %v193 = vmul.f32 %v189, %v189
    %v194 = vadd.f32 %v190, %v192
    %v195 = vadd.f32 %v191, %v193
    %v196 = vmul.f32 %v192, %v192
    %v197 = vmul.f32 %v193, %v193
    %v198 = vadd.f32 %v194, %v196
    %v199 = vadd.f32 %v195, %v197
    %v200 = vmul.f32 %v196, %v196
    %v201 = vmul.f32 %v197, %v197
    %v202 = vadd.f32 %v198, %v200
    %v203 = vadd.f32 %v199, %v201
    %v204 = vld [vmem:[%s5] sm:$0x1]
    %v206 = vlaneseq
    %v207 = vshrl.u32 %v206, 7
    %v208 = vsub.s32 0, %v207
    %v209 = vrot.slane %v204, %v208
    %v211 = vmul.f32 %v202, %v209
    %v212 = vmul.f32 %v203, %v209
    %vm213 = vcmask 130048
    %v214 = vsel %vm213, %v211, 0.0
    %215 = vadd.xlane.f32.xlu0 %v214
    %v216 = vpop.xlane.xlu0 %215
    %v217 = vsel %vm213, %v212, 0.0
    %218 = vadd.xlane.f32.xlu0 %v217
    %v219 = vpop.xlane.xlu0 %218
    %s220 = sld [smem:[#allocation2]]
    %v221 = vld [vmem:[%s4] sm:$0xff]
    %v222 = vld [vmem:[%s4 + $0x8] sm:$0xff]
    %v223 = vmul.f32 %v216, %v221
    %v224 = vmul.f32 %v219, %v222
    %vm225 = vcmask 7168
    %v226 = vsel %vm225, %v223, 0.0
    %v227 = vsel %vm225, %v224, 0.0
    %v228 = vadd.f32 %v226, %v227
    %229 = vadd.xlane.f32.xlu0 %v228
    %v230 = vpop.xlane.xlu0 %229
    %v231 = vrot.slane %v230, 4
    %v232 = vadd.f32 %v230, %v231
    %v233 = vrot.slane %v232, 2
    %v234 = vadd.f32 %v232, %v233
    %v235 = vrot.slane %v234, 1
    %v236 = vadd.f32 %v234, %v235
    %s237 = vtos %v236
    %s238 = sadd.f32 %s220, %s237
    %s239 = scalar_lea.smem [#allocation2], 0
    %240 = sst [smem:[%s239]] %s238
    // Predicated region
    $region30: #{tpu_custom_call.1} parent=1 // pred_check
      _
    $region31: #{tpu_custom_call.1} parent=1 // pred_check_branch
      %242 = sbr.rel (%p26) target = $region33
    $region32: #{tpu_custom_call.1} parent=1 // pred_region
      %s243 = sld [smem:[#allocation2]]
      %s244 = scalar_lea.smem [#allocation3], 0
      %245 = sst [smem:[%s244]] %s243
    $region33: #{tpu_custom_call.1} parent=1 // pred_fallthru
      _
    // Predicated region
    $region34: #{tpu_custom_call.1} parent=1 // pred_check
      _
    $region35: #{tpu_custom_call.1} parent=1 // pred_check_branch
      %247 = sbr.rel (0) target = $region37
    $region36: #{tpu_custom_call.1} parent=1 // pred_region
      %s249 = ssub.s32 16, 16
      %250 = vsyncadd [#allocation4], %s249
      %253 = dma.smem_to_hbm [#allocation3], 16, %s6, [#allocation4]
    $region37: #{tpu_custom_call.1} parent=1 // pred_fallthru
      _
    // Predicated region
    $region38: #{tpu_custom_call.1} parent=1 // pred_check
      _
    $region39: #{tpu_custom_call.1} parent=1 // pred_check_branch
      %255 = sbr.rel (0) target = $region41
    $region40: #{tpu_custom_call.1} parent=1 // pred_region
      %256 = dma.done [#allocation4], 16
    $region41: #{tpu_custom_call.1} parent=1 // pred_fallthru
      _
    %257 = sfence
    %258 = vsyncpa [#allocation4], 1

</llo_original>
